<compile_context>
chip_gen: v6e
topology: v6e:2x2x1
jax: 0.10.0
libtpu: 0.0.40
codegen_flags: <defaults>
</compile_context>

<pallas_src>
import jax
import jax.numpy as jnp
from jax.experimental import pallas as pl
from jax.experimental.pallas import tpu as pltpu


def _lora_kernel(x_ref, w_ref, a_ref, b_ref, o_ref):
    k = pl.program_id(2)

    @pl.when(k == 0)
    def _init():
        # Fold the (pre-scaled, bf16) low-rank delta into the accumulator init:
        #   o = (scaling * A)_tile @ B_tile        ((tm, r) @ (r, tn) on the MXU)
        o_ref[...] = jnp.dot(
            a_ref[...], b_ref[...], preferred_element_type=jnp.float32
        )

    # Base-model contribution of this K panel, accumulated straight into the
    # resident f32 output tile (output BlockSpec is k-invariant).
    o_ref[...] += jnp.dot(
        x_ref[...], w_ref[...], preferred_element_type=jnp.float32
    )


def _pick_tile(dim, candidates):
    """Largest candidate that divides `dim`; else full extent (always legal)."""
    for c in candidates:
        if c <= dim and dim % c == 0:
            return c
    return dim


def lora_forward(x, w, a, b, *, alpha, r, tm=None, tn=None, tk=None):
    """x: (S, H), w: (H, H), a: (H, r), b: (r, H) -> (S, H) float32.

    Computes (x @ w) + (alpha / r) * (a @ b), i.e. the LoRA module's forward
    with the wrapped model being a bias-free linear layer hidden -> hidden.
    """
    S, H = x.shape
    # The module adds an (H, H) delta elementwise to the base output; that is
    # only well-defined (non-broadcast-surprising) when S == H.
    assert S == H, "LoRA reference semantics require seq == hidden for the add"
    assert w.shape == (H, H), w.shape
    assert a.shape == (H, r), a.shape
    assert b.shape == (r, H), b.shape
    # The (tm, r) / (r, tn) BlockSpecs are legal only because r is the full
    # extent of that dim of A / B (and r % 8 == 0 for the sublane dim of B).
    assert a.shape[1] == r and b.shape[0] == r
    assert r % 8 == 0 or r == a.shape[1]

    scaling = float(alpha) / float(r)

    # Feed the MXU bf16 operands; keep f32 accumulation in-kernel.
    x = x.astype(jnp.bfloat16)
    w = w.astype(jnp.bfloat16)
    b = b.astype(jnp.bfloat16)
    # Pre-scale + pre-cast A once in the wrapper (H x r is a few KB, so this is
    # negligible) and drop the per-(i, j)-tile scale/cast VPU work.
    a = (a.astype(jnp.float32) * scaling).astype(jnp.bfloat16)

    # MXU/lane-friendly tiles; prefer large tiles (fewer grid steps, fewer HBM
    # re-reads); fall back to full extents for shapes not divisible by 128.
    tm = tm if tm is not None else _pick_tile(S, (512, 256, 128))
    tn = tn if tn is not None else _pick_tile(H, (512, 256, 128))
    tk = tk if tk is not None else _pick_tile(H, (1024, 512, 256, 128))
    # v7x megacore: keep >= 2 blocks along a parallel axis when possible so
    # both TensorCores get work (no-op on v5e/v6e single-TC chips).
    if S // tm == 1 and H // tn == 1:
        for cand in (256, 128):
            if tm > cand and S % cand == 0:
                tm = cand
                break
    assert S % tm == 0 and H % tn == 0 and H % tk == 0

    # VMEM audit: double-buffered bf16 input tiles + double-buffered f32 output
    # tile.  Guards the full-extent fallback from silently blowing VMEM
    # (v7x has only 64 MiB physical).
    est_vmem = 2 * ((tm * tk + tk * tn + tm * r + r * tn) * 2 + tm * tn * 4)
    budget = 48 << 20
    assert est_vmem <= budget, (
        f"derived tiles need ~{est_vmem} B VMEM > {budget} B; pass smaller tm/tn/tk"
    )
    vmem_limit = min(max(est_vmem + (8 << 20), 32 << 20), 56 << 20)

    grid = (S // tm, H // tn, H // tk)

    return pl.pallas_call(
        _lora_kernel,
        out_shape=jax.ShapeDtypeStruct((S, H), jnp.float32),
        grid_spec=pltpu.PrefetchScalarGridSpec(
            num_scalar_prefetch=0,
            grid=grid,
            in_specs=[
                pl.BlockSpec((tm, tk), lambda i, j, k: (i, k)),  # x panel
                pl.BlockSpec((tk, tn), lambda i, j, k: (k, j)),  # W panel
                pl.BlockSpec((tm, r), lambda i, j, k: (i, 0)),   # A (k-invariant)
                pl.BlockSpec((r, tn), lambda i, j, k: (0, j)),   # B (k-invariant)
            ],
            out_specs=pl.BlockSpec((tm, tn), lambda i, j, k: (i, j)),
        ),
        compiler_params=pltpu.CompilerParams(
            dimension_semantics=("parallel", "parallel", "arbitrary"),
            vmem_limit_bytes=vmem_limit,
        ),
    )(x, w, a, b)


if __name__ == "__main__":
    HIDDEN = 256   # model.hidden_size (small demo size, still lane-dense)
    R = 8
    ALPHA = 16
    SEQ = HIDDEN   # seq == hidden so the (H, H) delta adds elementwise

    key = jax.random.PRNGKey(0)
    kx, kw, ka, kb = jax.random.split(key, 4)

    # Deterministic synthetic parameters (torch.randn-style init).  Activations
    # and base weight are stored bf16 (what the kernel consumes); LoRA A/B stay
    # f32 params and are scaled/cast once inside the wrapper.
    x = jax.random.normal(kx, (SEQ, HIDDEN), dtype=jnp.float32).astype(jnp.bfloat16)
    w = jax.random.normal(kw, (HIDDEN, HIDDEN), dtype=jnp.float32).astype(jnp.bfloat16)
    a = jax.random.normal(ka, (HIDDEN, R), dtype=jnp.float32)   # LoRA A
    b = jax.random.normal(kb, (R, HIDDEN), dtype=jnp.float32)   # LoRA B

    out = jax.block_until_ready(lora_forward(x, w, a, b, alpha=ALPHA, r=R))

    # Pure-JAX reference of the exact PyTorch forward, computed from the same
    # bf16 operand values in f32 math (the kernel uses bf16 MXU operands with
    # f32 accumulation, so only accumulation-order noise remains).
    scaling = ALPHA / R
    xf = x.astype(jnp.float32)
    wf = w.astype(jnp.float32)
    af = (a * scaling).astype(jnp.bfloat16).astype(jnp.float32)
    bf = b.astype(jnp.bfloat16).astype(jnp.float32)
    ref = xf @ wf + af @ bf
    assert jnp.allclose(out, ref, atol=5e-2, rtol=1e-2), "mismatch vs reference"

    print("KERNEL_OK")
</pallas_src>

<mosaic_0001>
module attributes {stable_mosaic.version = 11 : i64} {
  func.func @_lora_kernel(%arg0: i32, %arg1: i32, %arg2: i32, %arg3: memref<128x256xbf16, #tpu.memory_space<vmem>>, %arg4: memref<256x256xbf16, #tpu.memory_space<vmem>>, %arg5: memref<128x8xbf16, #tpu.memory_space<vmem>>, %arg6: memref<8x256xbf16, #tpu.memory_space<vmem>>, %arg7: memref<128x256xf32, #tpu.memory_space<vmem>>) attributes {dimension_semantics = [#tpu.dimension_semantics<parallel>, #tpu.dimension_semantics<parallel>, #tpu.dimension_semantics<arbitrary>], iteration_bounds = array<i64: 2, 1, 1>, scalar_prefetch = 0 : i64, scratch_operands = 0 : i64, tpu.core_type = #tpu.core_type<tc>, window_params = [{transform_indices = @transform_0, window_bounds = array<i64: 128, 256>}, {transform_indices = @transform_1, window_bounds = array<i64: 256, 256>}, {transform_indices = @transform_2, window_bounds = array<i64: 128, 8>}, {transform_indices = @transform_3, window_bounds = array<i64: 8, 256>}, {transform_indices = @transform_4, window_bounds = array<i64: 128, 256>}]} {
    %c0_i32 = arith.constant 0 : i32
    %0 = arith.cmpi eq, %arg2, %c0_i32 : i32
    %1 = arith.extui %0 : i1 to i32
    %c0_i32_0 = arith.constant 0 : i32
    %2 = arith.cmpi ne, %1, %c0_i32_0 : i32
    scf.if %2 {
      %c0_8 = arith.constant 0 : index
      %c0_9 = arith.constant 0 : index
      %9 = vector.load %arg5[%c0_8, %c0_9] : memref<128x8xbf16, #tpu.memory_space<vmem>>, vector<128x8xbf16>
      %c0_10 = arith.constant 0 : index
      %c0_11 = arith.constant 0 : index
      %10 = vector.load %arg6[%c0_10, %c0_11] : memref<8x256xbf16, #tpu.memory_space<vmem>>, vector<8x256xbf16>
      %cst_12 = arith.constant dense<0.000000e+00> : vector<128x256xf32>
      %11 = tpu.matmul %9, %10, %cst_12 {dimension_numbers = #tpu.dot_dimension_numbers<[1], [0], [0], [1], [0, 0, 1, 1], [], []>} : vector<128x8xbf16>, vector<8x256xbf16>, vector<128x256xf32> -> vector<128x256xf32>
      %c0_13 = arith.constant 0 : index
      %c0_14 = arith.constant 0 : index
      %12 = vector.load %arg7[%c0_13, %c0_14] : memref<128x256xf32, #tpu.memory_space<vmem>>, vector<128x256xf32>
      tpu.vector_store %arg7[%c0_13, %c0_14], %11 {strides = array<i32>} : memref<128x256xf32, #tpu.memory_space<vmem>>, vector<128x256xf32>,
    } else {
    }
    %c0 = arith.constant 0 : index
    %c0_1 = arith.constant 0 : index
    %3 = vector.load %arg7[%c0, %c0_1] : memref<128x256xf32, #tpu.memory_space<vmem>>, vector<128x256xf32>
    %c0_2 = arith.constant 0 : index
    %c0_3 = arith.constant 0 : index
    %4 = vector.load %arg3[%c0_2, %c0_3] : memref<128x256xbf16, #tpu.memory_space<vmem>>, vector<128x256xbf16>
    %c0_4 = arith.constant 0 : index
    %c0_5 = arith.constant 0 : index
    %5 = vector.load %arg4[%c0_4, %c0_5] : memref<256x256xbf16, #tpu.memory_space<vmem>>, vector<256x256xbf16>
    %cst = arith.constant dense<0.000000e+00> : vector<128x256xf32>
    %6 = tpu.matmul %4, %5, %cst {dimension_numbers = #tpu.dot_dimension_numbers<[1], [0], [0], [1], [0, 0, 1, 1], [], []>} : vector<128x256xbf16>, vector<256x256xbf16>, vector<128x256xf32> -> vector<128x256xf32>
    %7 = arith.addf %3, %6 : vector<128x256xf32>
    %c0_6 = arith.constant 0 : index
    %c0_7 = arith.constant 0 : index
    %8 = vector.load %arg7[%c0_6, %c0_7] : memref<128x256xf32, #tpu.memory_space<vmem>>, vector<128x256xf32>
    tpu.vector_store %arg7[%c0_6, %c0_7], %7 {strides = array<i32>} : memref<128x256xf32, #tpu.memory_space<vmem>>, vector<128x256xf32>,
    return
  }
  func.func @transform_0(%arg0: i32, %arg1: i32, %arg2: i32) -> (i32, i32) {
    %c0_i32 = arith.constant 0 : i32
    return %arg0, %arg2 : i32, i32
  }
  func.func @transform_1(%arg0: i32, %arg1: i32, %arg2: i32) -> (i32, i32) {
    %c0_i32 = arith.constant 0 : i32
    return %arg2, %arg1 : i32, i32
  }
  func.func @transform_2(%arg0: i32, %arg1: i32, %arg2: i32) -> (i32, i32) {
    %c0_i32 = arith.constant 0 : i32
    %c0_i32_0 = arith.constant 0 : i32
    return %arg0, %c0_i32 : i32, i32
  }
  func.func @transform_3(%arg0: i32, %arg1: i32, %arg2: i32) -> (i32, i32) {
    %c0_i32 = arith.constant 0 : i32
    %c0_i32_0 = arith.constant 0 : i32
    return %c0_i32, %arg1 : i32, i32
  }
  func.func @transform_4(%arg0: i32, %arg1: i32, %arg2: i32) -> (i32, i32) {
    %c0_i32 = arith.constant 0 : i32
    return %arg0, %arg1 : i32, i32
  }
}

</mosaic_0001>

<llo_original>
// kernel: tpu_custom_call.1
$region0: #{tpu_custom_call.1}
  #allocation0 [shape = 'u32[]', space=smem, size = 0x4, offset = 0x4, fixed_abs, tag = 'smem constant byte address 0x4 - core index']
  #allocation1 [shape = 'u32[144,128]{1,0:T(1,128)}', space=vmem, size = 0x12000, scoped, tag = 'internal scratch']
  %s0 = inlined_call_operand.hbm [shape: bf16[256,256], index: 0, kind: input, shape index: {}]
  %s1 = inlined_call_operand.hbm [shape: bf16[256,256], index: 1, kind: input, shape index: {}]
  %s2 = inlined_call_operand.vmem [shape: bf16[256,8], index: 2, kind: input, shape index: {}]
  %s3 = inlined_call_operand.vmem [shape: bf16[8,256], index: 3, kind: input, shape index: {}]
  %s4 = inlined_call_operand.hbm [shape: f32[256,256], index: 4, kind: output, shape index: {}]
  %s5 = sld [smem:[#allocation0]]
  $region61: #{tpu_custom_call.1} parent=0
    _
  %s7 = ssub.s32 1, %s5
  %s8 = scalar_select 0, %s7, %s5
  $region1: #{tpu_custom_call.1} parent=0
    #allocation2 [shape = 'u8[131072]{0}', space=vmem, size = 0x20000, scoped, tag = 'input window, operand 0']
    #allocation3 [shape = 's32[2]{0}', space=sflag, size = 0x8, scoped, tag = 'scoped memory for tpu_custom_call.1']
    #allocation4 [shape = 's32[2]{0}', space=sflag, size = 0x8, scoped, tag = 'scoped memory for tpu_custom_call.1']
    #allocation5 [shape = 'u8[131072]{0}', space=vmem, size = 0x20000, scoped, tag = 'input window, operand 1, single buffered']
    #allocation6 [shape = 's32[1]{0}', space=sflag, size = 0x4, scoped, tag = 'scoped memory for tpu_custom_call.1']
    #allocation7 [shape = 'u8[262144]{0}', space=vmem, size = 0x40000, scoped, tag = 'output window, operand 0']
    %9 = vsyncpa [#allocation3], 0
    %s10 = scalar_lea.sflag [#allocation3], 1
    %11 = vsyncpa %s10, 0
    %12 = vsyncpa [#allocation6], 0
    %13 = vsyncpa [#allocation4], 0
    %s14 = scalar_lea.sflag [#allocation4], 1
    %15 = vsyncpa %s14, 0
    loop: start=0, step=1, limit=4
    $region2: #{tpu_custom_call.1} parent=1 // loop_pre_header
      _
    $region3: #{tpu_custom_call.1} parent=1 // loop_header
      %s17 = sphi 0, %s21
      %p18 = scmp.ge.s32.totalorder %s17, 4
      %s24 = sphi 0, %s43
      %s25 = sphi 0, %s39
      %s26 = sphi 0, %s35
      %s27 = sphi 0, %s24
      %s28 = sphi 0, %s25
      %s29 = sphi 0, %s26
      %s30 = sphi 0, %s27
      %s31 = sphi 0, %s28
      %s32 = sphi 0, %s29
      %s48 = sphi 0, %s50
      %s51 = sphi 0, %s48
      %s52 = sphi 0, %s51
      %s68 = sphi 0, %s52
      %s76 = sphi 0, %s78
      %s79 = sphi 0, %s76
      %s80 = sphi 0, %s79
      %s96 = sphi 0, %s80
      %s102 = sphi 0, %s104
      %s105 = sphi 0, %s102
      %s106 = sphi 0, %s105
      %s122 = sphi 0, %s106
      %s128 = sphi 0, %s130
      %s131 = sphi 0, %s128
      %s132 = sphi 0, %s131
      %s148 = sphi 0, %s132
      %s156 = sphi 0, %s158
      %s159 = sphi 0, %s156
      %s160 = sphi 0, %s159
      %s176 = sphi 0, %s160
    $region4: #{tpu_custom_call.1} parent=1 // loop_header_branch
      %20 = sbr.rel (%p18) target = $region8
    $region5: #{tpu_custom_call.1} parent=1 // loop_body
      %s22 = ssub.s32 %s17, 1
      %s23 = ssub.s32 %s17, 2
      %s33 = sadd.s32 1, %s26
      %p34 = scmp.ge.s32.totalorder %s33, 1
      %s35 = scalar_select %p34, 0, %s33
      %s36 = sadd.s32 1, %s25
      %s37 = scalar_select %p34, %s36, %s25
      %p38 = scmp.ge.s32.totalorder %s37, 1
      %s39 = scalar_select %p38, 0, %s37
      %s40 = sadd.s32 1, %s24
      %s41 = scalar_select %p38, %s40, %s24
      %p42 = scmp.ge.s32.totalorder %s41, 2
      %s43 = scalar_select %p42, 0, %s41
      %s44 = ssub.s32 %s24, %s43
      %s45 = ssub.s32 %s26, %s35
      %s46 = sor.u32 %s44, %s45
      %p47 = scmp.eq.s32.totalorder %s46, 0
      %s49 = sadd.s32 %s48, 1
      %s50 = scalar_select %p47, %s48, %s49
      %p53 = pneg %p47
      %p54 = scmp.eq.s32.totalorder %s17, 1
      %p55 = por %p53, %p54
      %p56 = scmp.ne.s32.totalorder %s48, %s51
      %p57 = scmp.eq.s32.totalorder %s17, 0
      %p58 = por %p56, %p57
      %p59 = scmp.ne.s32.totalorder %s48, %s51
      %p60 = scmp.eq.s32.totalorder %s22, 1
      %p61 = por %p59, %p60
      %p62 = scmp.ne.s32.totalorder %s51, %s52
      %p63 = scmp.eq.s32.totalorder %s22, 0
      %p64 = por %p62, %p63
      %p65 = scmp.ne.s32.totalorder %s51, %s52
      %p66 = scmp.eq.s32.totalorder %s23, 1
      %p67 = por %p65, %p66
      %p69 = scmp.ne.s32.totalorder %s52, %s68
      %p70 = scmp.eq.s32.totalorder %s23, 0
      %p71 = por %p69, %p70
      %s72 = ssub.s32 %s26, %s35
      %s73 = ssub.s32 %s25, %s39
      %s74 = sor.u32 %s72, %s73
      %p75 = scmp.eq.s32.totalorder %s74, 0
      %s77 = sadd.s32 %s76, 1
      %s78 = scalar_select %p75, %s76, %s77
      %p81 = pneg %p75
      %p82 = scmp.eq.s32.totalorder %s17, 1
      %p83 = por %p81, %p82
      %p84 = scmp.ne.s32.totalorder %s76, %s79
      %p85 = scmp.eq.s32.totalorder %s17, 0
      %p86 = por %p84, %p85
      %p87 = scmp.ne.s32.totalorder %s76, %s79
      %p88 = scmp.eq.s32.totalorder %s22, 1
      %p89 = por %p87, %p88
      %p90 = scmp.ne.s32.totalorder %s79, %s80
      %p91 = scmp.eq.s32.totalorder %s22, 0
      %p92 = por %p90, %p91
      %p93 = scmp.ne.s32.totalorder %s79, %s80
      %p94 = scmp.eq.s32.totalorder %s23, 1
      %p95 = por %p93, %p94
      %p97 = scmp.ne.s32.totalorder %s80, %s96
      %p98 = scmp.eq.s32.totalorder %s23, 0
      %p99 = por %p97, %p98
      %s100 = ssub.s32 %s24, %s43
      %p101 = scmp.eq.s32.totalorder %s100, 0
      %s103 = sadd.s32 %s102, 1
      %s104 = scalar_select %p101, %s102, %s103
      %p107 = pneg %p101
      %p108 = scmp.eq.s32.totalorder %s17, 1
      %p109 = por %p107, %p108
      %p110 = scmp.ne.s32.totalorder %s102, %s105
      %p111 = scmp.eq.s32.totalorder %s17, 0
      %p112 = por %p110, %p111
      %p113 = scmp.ne.s32.totalorder %s102, %s105
      %p114 = scmp.eq.s32.totalorder %s22, 1
      %p115 = por %p113, %p114
      %p116 = scmp.ne.s32.totalorder %s105, %s106
      %p117 = scmp.eq.s32.totalorder %s22, 0
      %p118 = por %p116, %p117
      %p119 = scmp.ne.s32.totalorder %s105, %s106
      %p120 = scmp.eq.s32.totalorder %s23, 1
      %p121 = por %p119, %p120
      %p123 = scmp.ne.s32.totalorder %s106, %s122
      %p124 = scmp.eq.s32.totalorder %s23, 0
      %p125 = por %p123, %p124
      %s126 = ssub.s32 %s25, %s39
      %p127 = scmp.eq.s32.totalorder %s126, 0
      %s129 = sadd.s32 %s128, 1
      %s130 = scalar_select %p127, %s128, %s129
      %p133 = pneg %p127
      %p134 = scmp.eq.s32.totalorder %s17, 1
      %p135 = por %p133, %p134
      %p136 = scmp.ne.s32.totalorder %s128, %s131
      %p137 = scmp.eq.s32.totalorder %s17, 0
      %p138 = por %p136, %p137
      %p139 = scmp.ne.s32.totalorder %s128, %s131
      %p140 = scmp.eq.s32.totalorder %s22, 1
      %p141 = por %p139, %p140
      %p142 = scmp.ne.s32.totalorder %s131, %s132
      %p143 = scmp.eq.s32.totalorder %s22, 0
      %p144 = por %p142, %p143
      %p145 = scmp.ne.s32.totalorder %s131, %s132
      %p146 = scmp.eq.s32.totalorder %s23, 1
      %p147 = por %p145, %p146
      %p149 = scmp.ne.s32.totalorder %s132, %s148
      %p150 = scmp.eq.s32.totalorder %s23, 0
      %p151 = por %p149, %p150
      %s152 = ssub.s32 %s24, %s43
      %s153 = ssub.s32 %s25, %s39
      %s154 = sor.u32 %s152, %s153
      %p155 = scmp.eq.s32.totalorder %s154, 0
      %s157 = sadd.s32 %s156, 1
      %s158 = scalar_select %p155, %s156, %s157
      %p161 = pneg %p155
      %p162 = scmp.eq.s32.totalorder %s17, 1
      %p163 = por %p161, %p162
      %p164 = scmp.ne.s32.totalorder %s156, %s159
      %p165 = scmp.eq.s32.totalorder %s17, 0
      %p166 = por %p164, %p165
      %p167 = scmp.ne.s32.totalorder %s156, %s159
      %p168 = scmp.eq.s32.totalorder %s22, 1
      %p169 = por %p167, %p168
      %p170 = scmp.ne.s32.totalorder %s159, %s160
      %p171 = scmp.eq.s32.totalorder %s22, 0
      %p172 = por %p170, %p171
      %p173 = scmp.ne.s32.totalorder %s159, %s160
      %p174 = scmp.eq.s32.totalorder %s23, 1
      %p175 = por %p173, %p174
      %p177 = scmp.ne.s32.totalorder %s160, %s176
      %p178 = scmp.eq.s32.totalorder %s23, 0
      %p179 = por %p177, %p178
      %p180 = scmp.le.s32.totalorder 1, %s17
      %p181 = scmp.lt.s32.totalorder %s17, 3
      %p182 = pnand %p180, %p181
      %p183 = pneg %p182
      // Predicated region
      $region9: #{tpu_custom_call.1} parent=5 // pred_check
        _
      $region10: #{tpu_custom_call.1} parent=5 // pred_check_branch
        %185 = sbr.rel (%p182) target = $region12
      $region11: #{tpu_custom_call.1} parent=5 // pred_region
        %s186 = ssub.s32 %s17, 1
        // Predicated region
        $region13: #{tpu_custom_call.1} parent=11 // pred_check
          %p187 = pneg %p92
        $region14: #{tpu_custom_call.1} parent=11 // pred_check_branch
          %189 = sbr.rel (%p187) target = $region16
        $region15: #{tpu_custom_call.1} parent=11 // pred_region
          %s190 = smul.u32 32, %s29
          %s191 = smul.u32 2, %s28
          %s193 = ssub.s32 4096, 4096
          %194 = vsyncadd [#allocation6], %s193
          %s195 = smul.addr %s190, 2
          %s196 = sadd.s32 %s191, %s195
          %s197 = smul.addr %s196, 64
          %s198 = scalar_lea.hbm %s1, %s197
          %s199 = sshll.u32 [#allocation5], 4
          %s200 = int_to_ptr.vmem [resolvable:$true] %s199
          %205 = dma.hbm_to_vmem [thread:$0]  %s198, 4096, %s200, [#allocation6], 128, 128, 8
        $region16: #{tpu_custom_call.1} parent=11 // pred_fallthru
          _
        // Predicated region
        $region17: #{tpu_custom_call.1} parent=11 // pred_check
          %p206 = pneg %p144
        $region18: #{tpu_custom_call.1} parent=11 // pred_check_branch
          %208 = sbr.rel (%p206) target = $region20
        $region19: #{tpu_custom_call.1} parent=11 // pred_region
          %s209 = smul.u32 2, %s28
          %p210 = scmp.lt.s32.totalorder %s209, 1
          %s211 = scalar_select %p210, %s209, 1
          %s212 = smul.addr %s211, 4
          %s213 = scalar_lea.vmem %s3, %s212
          %s214 = smul.u32 2, %s28
        $region20: #{tpu_custom_call.1} parent=11 // pred_fallthru
          _
      $region12: #{tpu_custom_call.1} parent=5 // pred_fallthru
        _
      %p215 = scmp.lt.s32.totalorder %s17, 2
      // Predicated region
      $region21: #{tpu_custom_call.1} parent=5 // pred_check
        %p216 = pneg %p215
      $region22: #{tpu_custom_call.1} parent=5 // pred_check_branch
        %218 = sbr.rel (%p216) target = $region24
      $region23: #{tpu_custom_call.1} parent=5 // pred_region
        // Predicated region
        $region25: #{tpu_custom_call.1} parent=23 // pred_check
          %p219 = pneg %p58
        $region26: #{tpu_custom_call.1} parent=23 // pred_check_branch
          %221 = sbr.rel (%p219) target = $region28
        $region27: #{tpu_custom_call.1} parent=23 // pred_region
          %s222 = sand.u32 %s48, 1
          %s223 = scalar_lea.sflag [#allocation3], %s222
          %s224 = sand.u32 %s48, 1
          %s225 = smul.addr %s224, 128
          %s226 = scalar_lea.vmem [#allocation2], %s225
          %s227 = smul.u32 16, %s24
          %s228 = smul.u32 2, %s26
          %s230 = ssub.s32 2048, 2048
          %231 = vsyncadd %s223, %s230
          %s232 = smul.addr %s227, 2
          %s233 = sadd.s32 %s228, %s232
          %s234 = smul.addr %s233, 64
          %s235 = scalar_lea.hbm %s0, %s234
          %s236 = sshll.u32 %s226, 4
          %s237 = int_to_ptr.vmem [resolvable:$true] %s236
          %242 = dma.hbm_to_vmem [thread:$0]  %s235, 2048, %s237, %s223, 128, 128, 8
        $region28: #{tpu_custom_call.1} parent=23 // pred_fallthru
          _
        // Predicated region
        $region29: #{tpu_custom_call.1} parent=23 // pred_check
          %p243 = pneg %p112
        $region30: #{tpu_custom_call.1} parent=23 // pred_check_branch
          %245 = sbr.rel (%p243) target = $region32
        $region31: #{tpu_custom_call.1} parent=23 // pred_region
          %s246 = smul.u32 16, %s24
          %p247 = scmp.lt.s32.totalorder %s246, 31
          %s248 = scalar_select %p247, %s246, 31
          %s249 = smul.addr %s248, 4
          %s250 = scalar_lea.vmem %s2, %s249
          %s251 = smul.u32 16, %s24
        $region32: #{tpu_custom_call.1} parent=23 // pred_fallthru
          _
      $region24: #{tpu_custom_call.1} parent=5 // pred_fallthru
        _
      %p252 = scmp.le.s32.totalorder 1, %s17
      %p253 = scmp.lt.s32.totalorder %s17, 3
      %p254 = pnand %p252, %p253
      %p255 = pneg %p254
      // Predicated region
      $region33: #{tpu_custom_call.1} parent=5 // pred_check
        _
      $region34: #{tpu_custom_call.1} parent=5 // pred_check_branch
        %257 = sbr.rel (%p254) target = $region36
      $region35: #{tpu_custom_call.1} parent=5 // pred_region
        %s258 = ssub.s32 %s17, 1
        %s259 = sand.u32 %s51, 1
        %s260 = scalar_lea.sflag [#allocation3], %s259
        %s261 = sand.u32 %s51, 1
        %s262 = smul.addr %s261, 128
        %s263 = scalar_lea.vmem [#allocation2], %s262
        // Predicated region
        $region37: #{tpu_custom_call.1} parent=35 // pred_check
          %p264 = pneg %p64
        $region38: #{tpu_custom_call.1} parent=35 // pred_check_branch
          %266 = sbr.rel (%p264) target = $region40
        $region39: #{tpu_custom_call.1} parent=35 // pred_region
          %267 = dma.done %s260, 2048
        $region40: #{tpu_custom_call.1} parent=35 // pred_fallthru
          _
        // Predicated region
        $region41: #{tpu_custom_call.1} parent=35 // pred_check
          %p268 = pneg %p92
        $region42: #{tpu_custom_call.1} parent=35 // pred_check_branch
          %270 = sbr.rel (%p268) target = $region44
        $region43: #{tpu_custom_call.1} parent=35 // pred_region
          %271 = dma.done [#allocation6], 4096
        $region44: #{tpu_custom_call.1} parent=35 // pred_fallthru
          _
        %s272 = sand.u32 %s51, 1
        %s273 = scalar_lea.sflag [#allocation3], %s272
        %s274 = sand.u32 %s51, 1
        %s275 = smul.addr %s274, 128
        %s276 = scalar_lea.vmem [#allocation2], %s275
        %p277 = pneg %p64
        %p278 = pneg %p61
        %p279 = pneg %p92
        %p280 = pneg %p89
        %s281 = smul.u32 16, %s27
        %p282 = scmp.lt.s32.totalorder %s281, 31
        %s283 = scalar_select %p282, %s281, 31
        %s284 = smul.addr %s283, 4
        %s285 = scalar_lea.vmem %s2, %s284
        %p286 = pneg %p118
        %p287 = pneg %p115
        %s288 = smul.u32 2, %s28
        %p289 = scmp.lt.s32.totalorder %s288, 1
        %s290 = scalar_select %p289, %s288, 1
        %s291 = smul.addr %s290, 4
        %s292 = scalar_lea.vmem %s3, %s291
        %p293 = pneg %p144
        %p294 = pneg %p141
        %p295 = pneg %p172
        %p296 = pneg %p169
        %s297 = sand.u32 %s159, 1
        %s298 = scalar_lea.sflag [#allocation4], %s297
        %s299 = sand.u32 %s159, 1
        %s300 = smul.addr %s299, 256
        %s301 = scalar_lea.vmem [#allocation7], %s300
        %s302 = smul.u32 16, %s27
        %s303 = smul.u32 2, %s29
        %s304 = smul.u32 32, %s29
        %s305 = smul.u32 2, %s28
        %s306 = smul.u32 16, %s27
        %p307 = scmp.lt.s32.totalorder %s306, 31
        %s308 = scalar_select %p307, %s306, 31
        %s309 = smul.addr %s308, 4
        %s310 = scalar_lea.vmem %s2, %s309
        %s311 = smul.u32 16, %s27
        %s312 = smul.u32 2, %s28
        %p313 = scmp.lt.s32.totalorder %s312, 1
        %s314 = scalar_select %p313, %s312, 1
        %s315 = smul.addr %s314, 4
        %s316 = scalar_lea.vmem %s3, %s315
        %s317 = smul.u32 2, %s28
        %s318 = smul.u32 16, %s27
        %s319 = smul.u32 2, %s28
        %p321 = scmp.eq.s32.totalorder %s29, 0
        // Predicated region
        $region45: #{tpu_custom_call.1} parent=35 // pred_check
          %p322 = pneg %p321
        $region46: #{tpu_custom_call.1} parent=35 // pred_check_branch
          %324 = sbr.rel (%p322) target = $region48
        $region47: #{tpu_custom_call.1} parent=35 // pred_region
          %v325 = vld [vmem:[%s310] sm:$0xf]
          %v326 = vld [vmem:[%s310 + $0x4] sm:$0xf]
          %v327 = vld [vmem:[%s310 + $0x8] sm:$0xf]
          %v328 = vld [vmem:[%s310 + $0xc] sm:$0xf]
          %v329 = vld [vmem:[%s310 + $0x10] sm:$0xf]
          %v330 = vld [vmem:[%s310 + $0x14] sm:$0xf]
          %v331 = vld [vmem:[%s310 + $0x18] sm:$0xf]
          %v332 = vld [vmem:[%s310 + $0x1c] sm:$0xf]
          %v333 = vld [vmem:[%s310 + $0x20] sm:$0xf]
          %v334 = vld [vmem:[%s310 + $0x24] sm:$0xf]
          %v335 = vld [vmem:[%s310 + $0x28] sm:$0xf]
          %v336 = vld [vmem:[%s310 + $0x2c] sm:$0xf]
          %v337 = vld [vmem:[%s310 + $0x30] sm:$0xf]
          %v338 = vld [vmem:[%s310 + $0x34] sm:$0xf]
          %v339 = vld [vmem:[%s310 + $0x38] sm:$0xf]
          %v340 = vld [vmem:[%s310 + $0x3c] sm:$0xf]
          %v341 = vld [vmem:[%s316] sm:$0xff]
          %v358 = vunpack.c.l.b16 %v325
          %v359 = vunpack.c.l.b16 %v326
          %v360 = vunpack.c.l.b16 %v327
          %v361 = vunpack.c.l.b16 %v328
          %v362 = vunpack.c.l.b16 %v329
          %v363 = vunpack.c.l.b16 %v330
          %v364 = vunpack.c.l.b16 %v331
          %v365 = vunpack.c.l.b16 %v332
          %v366 = vunpack.c.l.b16 %v333
          %v367 = vunpack.c.l.b16 %v334
          %v368 = vunpack.c.l.b16 %v335
          %v369 = vunpack.c.l.b16 %v336
          %v370 = vunpack.c.l.b16 %v337
          %v371 = vunpack.c.l.b16 %v338
          %v372 = vunpack.c.l.b16 %v339
          %v373 = vunpack.c.l.b16 %v340
          %v374 = vpack.c.b16 %v359, %v358
          %v375 = vpack.c.b16 %v361, %v360
          %v376 = vpack.c.b16 %v363, %v362
          %v377 = vpack.c.b16 %v365, %v364
          %v378 = vpack.c.b16 %v367, %v366
          %v379 = vpack.c.b16 %v369, %v368
          %v380 = vpack.c.b16 %v371, %v370
          %v381 = vpack.c.b16 %v373, %v372
          %v383 = vunpack.c.l.b16 %v341
          %v384 = vunpack.c.h.b16 %v341
          %v385 = vpack.c.b16 %v383, %v383
          %v386 = vpack.c.b16 %v384, %v384
          %vm387 = vcmask 64512
          %v389 = vsel %vm387, %v374, 0
          %v392 = vsel %vm387, %v375, 0
          %v395 = vsel %vm387, %v376, 0
          %v398 = vsel %vm387, %v377, 0
          %v401 = vsel %vm387, %v378, 0
          %v404 = vsel %vm387, %v379, 0
          %v407 = vsel %vm387, %v380, 0
          %v410 = vsel %vm387, %v381, 0
          %vm412 = vcmask 1043456
          %v414 = vsel %vm412, %v385, 0
          %v417 = vsel %vm412, %v386, 0
          %419 = vmatprep.subr.bf16.mxu0 0
          %420 = vmatpush1.bf16.msra.mxu0 0
          %421 = vmatprep.subr.bf16.mxu0 0
          %422 = vmatpush1.bf16.msra.mxu0 0
          %423 = vmatprep.subr.bf16.mxu0 0
          %424 = vmatpush1.bf16.msra.mxu0 0
          %425 = vmatprep.subr.bf16.mxu0 0
          %426 = vmatpush1.bf16.msra.mxu0 0
          %427 = vmatprep.subr.bf16.mxu0 0
          %428 = vmatpush1.bf16.msra.mxu0 0
          %429 = vmatprep.subr.bf16.mxu0 0
          %430 = vmatpush1.bf16.msra.mxu0 0
          %431 = vmatprep.subr.bf16.mxu0 0
          %432 = vmatpush1.bf16.msra.mxu0 0
          %433 = vmatprep.subr.bf16.mxu0 %v417
          %434 = vmatpush1.bf16.msra.mxu0 %v414
          %435 = vmatprep.subr.bf16.mxu0 0
          %436 = vmatpush2.bf16.msra.mxu0 0
          %437 = vmatprep.subr.bf16.mxu0 0
          %438 = vmatpush2.bf16.msra.mxu0 0
          %439 = vmatprep.subr.bf16.mxu0 0
          %440 = vmatpush2.bf16.msra.mxu0 0
          %441 = vmatprep.subr.bf16.mxu0 0
          %442 = vmatpush2.bf16.msra.mxu0 0
          %443 = vmatprep.subr.bf16.mxu0 0
          %444 = vmatpush2.bf16.msra.mxu0 0
          %445 = vmatprep.subr.bf16.mxu0 0
          %446 = vmatpush2.bf16.msra.mxu0 0
          %447 = vmatprep.subr.bf16.mxu0 0
          %448 = vmatpush2.bf16.msra.mxu0 0
          %449 = vmatprep.subr.bf16.mxu0 0
          %450 = vmatpush2.bf16.msra.mxu0 0
          %451 = vmatprep.mubr.bf16.mxu0 0
          %452 = vmatmul.mubr.bf16.gmra.mxu0 %v389
          %v453 = vpop.f32.mrf.mxu0
          %v454 = vadd.f32 0.0, %v453
          %v455 = vpop.f32.mrf.mxu0
          %v456 = vadd.f32 0.0, %v455
          %v457 = vpop.f32.mrf.mxu0
          %v458 = vadd.f32 0.0, %v457
          %v459 = vpop.f32.mrf.mxu0
          %v460 = vadd.f32 0.0, %v459
          %461 = vmatprep.mubr.bf16.mxu0 0
          %462 = vmatmul.mubr.bf16.gmra.mxu0 %v392
          %v463 = vpop.f32.mrf.mxu0
          %v464 = vadd.f32 0.0, %v463
          %v465 = vpop.f32.mrf.mxu0
          %v466 = vadd.f32 0.0, %v465
          %v467 = vpop.f32.mrf.mxu0
          %v468 = vadd.f32 0.0, %v467
          %v469 = vpop.f32.mrf.mxu0
          %v470 = vadd.f32 0.0, %v469
          %471 = vmatprep.mubr.bf16.mxu0 0
          %472 = vmatmul.mubr.bf16.gmra.mxu0 %v395
          %v473 = vpop.f32.mrf.mxu0
          %v474 = vadd.f32 0.0, %v473
          %v475 = vpop.f32.mrf.mxu0
          %v476 = vadd.f32 0.0, %v475
          %v477 = vpop.f32.mrf.mxu0
          %v478 = vadd.f32 0.0, %v477
          %v479 = vpop.f32.mrf.mxu0
          %v480 = vadd.f32 0.0, %v479
          %481 = vmatprep.mubr.bf16.mxu0 0
          %482 = vmatmul.mubr.bf16.gmra.mxu0 %v398
          %v483 = vpop.f32.mrf.mxu0
          %v484 = vadd.f32 0.0, %v483
          %v485 = vpop.f32.mrf.mxu0
          %v486 = vadd.f32 0.0, %v485
          %v487 = vpop.f32.mrf.mxu0
          %v488 = vadd.f32 0.0, %v487
          %v489 = vpop.f32.mrf.mxu0
          %v490 = vadd.f32 0.0, %v489
          %491 = vmatprep.mubr.bf16.mxu0 0
          %492 = vmatmul.mubr.bf16.gmra.mxu0 %v401
          %v493 = vpop.f32.mrf.mxu0
          %v494 = vadd.f32 0.0, %v493
          %v495 = vpop.f32.mrf.mxu0
          %v496 = vadd.f32 0.0, %v495
          %v497 = vpop.f32.mrf.mxu0
          %v498 = vadd.f32 0.0, %v497
          %v499 = vpop.f32.mrf.mxu0
          %v500 = vadd.f32 0.0, %v499
          %501 = vmatprep.mubr.bf16.mxu0 0
          %502 = vmatmul.mubr.bf16.gmra.mxu0 %v404
          %v503 = vpop.f32.mrf.mxu0
          %v504 = vadd.f32 0.0, %v503
          %v505 = vpop.f32.mrf.mxu0
          %v506 = vadd.f32 0.0, %v505
          %v507 = vpop.f32.mrf.mxu0
          %v508 = vadd.f32 0.0, %v507
          %v509 = vpop.f32.mrf.mxu0
          %v510 = vadd.f32 0.0, %v509
          %511 = vmatprep.mubr.bf16.mxu0 0
          %512 = vmatmul.mubr.bf16.gmra.mxu0 %v407
          %v513 = vpop.f32.mrf.mxu0
          %v514 = vadd.f32 0.0, %v513
          %v515 = vpop.f32.mrf.mxu0
          %v516 = vadd.f32 0.0, %v515
          %v517 = vpop.f32.mrf.mxu0
          %v518 = vadd.f32 0.0, %v517
          %v519 = vpop.f32.mrf.mxu0
          %v520 = vadd.f32 0.0, %v519
          %521 = vmatprep.mubr.bf16.mxu0 0
          %522 = vmatmul.mubr.bf16.gmra.mxu0 %v410
          %v523 = vpop.f32.mrf.mxu0
          %v524 = vadd.f32 0.0, %v523
          %v525 = vpop.f32.mrf.mxu0
          %v526 = vadd.f32 0.0, %v525
          %v527 = vpop.f32.mrf.mxu0
          %v528 = vadd.f32 0.0, %v527
          %v529 = vpop.f32.mrf.mxu0
          %v530 = vadd.f32 0.0, %v529
          %531 = vdwg.mxu0
          %532 = vst [vmem:[%s301] sm:$0xff] %v454
          %533 = vst [vmem:[%s301 + $0x8] sm:$0xff] %v456
          %534 = vst [vmem:[%s301 + $0x10] sm:$0xff] %v458
          %535 = vst [vmem:[%s301 + $0x18] sm:$0xff] %v460
          %536 = vst [vmem:[%s301 + $0x20] sm:$0xff] %v464
          %537 = vst [vmem:[%s301 + $0x28] sm:$0xff] %v466
          %538 = vst [vmem:[%s301 + $0x30] sm:$0xff] %v468
          %539 = vst [vmem:[%s301 + $0x38] sm:$0xff] %v470
          %540 = vst [vmem:[%s301 + $0x40] sm:$0xff] %v474
          %541 = vst [vmem:[%s301 + $0x48] sm:$0xff] %v476
          %542 = vst [vmem:[%s301 + $0x50] sm:$0xff] %v478
          %543 = vst [vmem:[%s301 + $0x58] sm:$0xff] %v480
          %544 = vst [vmem:[%s301 + $0x60] sm:$0xff] %v484
          %545 = vst [vmem:[%s301 + $0x68] sm:$0xff] %v486
          %546 = vst [vmem:[%s301 + $0x70] sm:$0xff] %v488
          %547 = vst [vmem:[%s301 + $0x78] sm:$0xff] %v490
          %548 = vst [vmem:[%s301 + $0x80] sm:$0xff] %v494
          %549 = vst [vmem:[%s301 + $0x88] sm:$0xff] %v496
          %550 = vst [vmem:[%s301 + $0x90] sm:$0xff] %v498
          %551 = vst [vmem:[%s301 + $0x98] sm:$0xff] %v500
          %552 = vst [vmem:[%s301 + $0xa0] sm:$0xff] %v504
          %553 = vst [vmem:[%s301 + $0xa8] sm:$0xff] %v506
          %554 = vst [vmem:[%s301 + $0xb0] sm:$0xff] %v508
          %555 = vst [vmem:[%s301 + $0xb8] sm:$0xff] %v510
          %556 = vst [vmem:[%s301 + $0xc0] sm:$0xff] %v514
          %557 = vst [vmem:[%s301 + $0xc8] sm:$0xff] %v516
          %558 = vst [vmem:[%s301 + $0xd0] sm:$0xff] %v518
          %559 = vst [vmem:[%s301 + $0xd8] sm:$0xff] %v520
          %560 = vst [vmem:[%s301 + $0xe0] sm:$0xff] %v524
          %561 = vst [vmem:[%s301 + $0xe8] sm:$0xff] %v526
          %562 = vst [vmem:[%s301 + $0xf0] sm:$0xff] %v528
          %563 = vst [vmem:[%s301 + $0xf8] sm:$0xff] %v530
        $region48: #{tpu_custom_call.1} parent=35 // pred_fallthru
          _
        %v564 = vld [vmem:[%s301] sm:$0xff]
        %v565 = vld [vmem:[%s301 + $0x8] sm:$0xff]
        %v566 = vld [vmem:[%s301 + $0x10] sm:$0xff]
        %v567 = vld [vmem:[%s301 + $0x18] sm:$0xff]
        %v568 = vld [vmem:[%s301 + $0x20] sm:$0xff]
        %v569 = vld [vmem:[%s301 + $0x28] sm:$0xff]
        %v570 = vld [vmem:[%s301 + $0x30] sm:$0xff]
        %v571 = vld [vmem:[%s301 + $0x38] sm:$0xff]
        %v572 = vld [vmem:[%s301 + $0x40] sm:$0xff]
        %v573 = vld [vmem:[%s301 + $0x48] sm:$0xff]
        %v574 = vld [vmem:[%s301 + $0x50] sm:$0xff]
        %v575 = vld [vmem:[%s301 + $0x58] sm:$0xff]
        %v576 = vld [vmem:[%s301 + $0x60] sm:$0xff]
        %v577 = vld [vmem:[%s301 + $0x68] sm:$0xff]
        %v578 = vld [vmem:[%s301 + $0x70] sm:$0xff]
        %v579 = vld [vmem:[%s301 + $0x78] sm:$0xff]
        %v580 = vld [vmem:[%s301 + $0x80] sm:$0xff]
        %v581 = vld [vmem:[%s301 + $0x88] sm:$0xff]
        %v582 = vld [vmem:[%s301 + $0x90] sm:$0xff]
        %v583 = vld [vmem:[%s301 + $0x98] sm:$0xff]
        %v584 = vld [vmem:[%s301 + $0xa0] sm:$0xff]
        %v585 = vld [vmem:[%s301 + $0xa8] sm:$0xff]
        %v586 = vld [vmem:[%s301 + $0xb0] sm:$0xff]
        %v587 = vld [vmem:[%s301 + $0xb8] sm:$0xff]
        %v588 = vld [vmem:[%s301 + $0xc0] sm:$0xff]
        %v589 = vld [vmem:[%s301 + $0xc8] sm:$0xff]
        %v590 = vld [vmem:[%s301 + $0xd0] sm:$0xff]
        %v591 = vld [vmem:[%s301 + $0xd8] sm:$0xff]
        %v592 = vld [vmem:[%s301 + $0xe0] sm:$0xff]
        %v593 = vld [vmem:[%s301 + $0xe8] sm:$0xff]
        %v594 = vld [vmem:[%s301 + $0xf0] sm:$0xff]
        %v595 = vld [vmem:[%s301 + $0xf8] sm:$0xff]
        %v596 = vld [vmem:[%s263] sm:$0xff]
        %v597 = vld [vmem:[%s263 + $0x8] sm:$0xff]
        %v598 = vld [vmem:[%s263 + $0x10] sm:$0xff]
        %v599 = vld [vmem:[%s263 + $0x18] sm:$0xff]
        %v600 = vld [vmem:[%s263 + $0x20] sm:$0xff]
        %v601 = vld [vmem:[%s263 + $0x28] sm:$0xff]
        %v602 = vld [vmem:[%s263 + $0x30] sm:$0xff]
        %v603 = vld [vmem:[%s263 + $0x38] sm:$0xff]
        %v604 = vld [vmem:[%s263 + $0x40] sm:$0xff]
        %v605 = vld [vmem:[%s263 + $0x48] sm:$0xff]
        %v606 = vld [vmem:[%s263 + $0x50] sm:$0xff]
        %v607 = vld [vmem:[%s263 + $0x58] sm:$0xff]
        %v608 = vld [vmem:[%s263 + $0x60] sm:$0xff]
        %v609 = vld [vmem:[%s263 + $0x68] sm:$0xff]
        %v610 = vld [vmem:[%s263 + $0x70] sm:$0xff]
        %v611 = vld [vmem:[%s263 + $0x78] sm:$0xff]
        %v612 = vld [vmem:[#allocation5] sm:$0xff]
        %v613 = vld [vmem:[#allocation5 + $0x8] sm:$0xff]
        %v614 = vld [vmem:[#allocation5 + $0x10] sm:$0xff]
        %v615 = vld [vmem:[#allocation5 + $0x18] sm:$0xff]
        %v616 = vld [vmem:[#allocation5 + $0x20] sm:$0xff]
        %v617 = vld [vmem:[#allocation5 + $0x28] sm:$0xff]
        %v618 = vld [vmem:[#allocation5 + $0x30] sm:$0xff]
        %v619 = vld [vmem:[#allocation5 + $0x38] sm:$0xff]
        %v620 = vld [vmem:[#allocation5 + $0x40] sm:$0xff]
        %v621 = vld [vmem:[#allocation5 + $0x48] sm:$0xff]
        %v622 = vld [vmem:[#allocation5 + $0x50] sm:$0xff]
        %v623 = vld [vmem:[#allocation5 + $0x58] sm:$0xff]
        %v624 = vld [vmem:[#allocation5 + $0x60] sm:$0xff]
        %v625 = vld [vmem:[#allocation5 + $0x68] sm:$0xff]
        %v626 = vld [vmem:[#allocation5 + $0x70] sm:$0xff]
        %v627 = vld [vmem:[#allocation5 + $0x78] sm:$0xff]
        %v628 = vld [vmem:[#allocation5 + $0x80] sm:$0xff]
        %v629 = vld [vmem:[#allocation5 + $0x88] sm:$0xff]
        %v630 = vld [vmem:[#allocation5 + $0x90] sm:$0xff]
        %v631 = vld [vmem:[#allocation5 + $0x98] sm:$0xff]
        %v632 = vld [vmem:[#allocation5 + $0xa0] sm:$0xff]
        %v633 = vld [vmem:[#allocation5 + $0xa8] sm:$0xff]
        %v634 = vld [vmem:[#allocation5 + $0xb0] sm:$0xff]
        %v635 = vld [vmem:[#allocation5 + $0xb8] sm:$0xff]
        %v636 = vld [vmem:[#allocation5 + $0xc0] sm:$0xff]
        %v637 = vld [vmem:[#allocation5 + $0xc8] sm:$0xff]
        %v638 = vld [vmem:[#allocation5 + $0xd0] sm:$0xff]
        %v639 = vld [vmem:[#allocation5 + $0xd8] sm:$0xff]
        %v640 = vld [vmem:[#allocation5 + $0xe0] sm:$0xff]
        %v641 = vld [vmem:[#allocation5 + $0xe8] sm:$0xff]
        %v642 = vld [vmem:[#allocation5 + $0xf0] sm:$0xff]
        %v643 = vld [vmem:[#allocation5 + $0xf8] sm:$0xff]
        %v660 = vunpack.c.l.b16 %v596
        %v661 = vunpack.c.h.b16 %v596
        %v662 = vunpack.c.l.b16 %v597
        %v663 = vunpack.c.h.b16 %v597
        %v664 = vunpack.c.l.b16 %v598
        %v665 = vunpack.c.h.b16 %v598
        %v666 = vunpack.c.l.b16 %v599
        %v667 = vunpack.c.h.b16 %v599
        %v668 = vunpack.c.l.b16 %v600
        %v669 = vunpack.c.h.b16 %v600
        %v670 = vunpack.c.l.b16 %v601
        %v671 = vunpack.c.h.b16 %v601
        %v672 = vunpack.c.l.b16 %v602
        %v673 = vunpack.c.h.b16 %v602
        %v674 = vunpack.c.l.b16 %v603
        %v675 = vunpack.c.h.b16 %v603
        %v676 = vunpack.c.l.b16 %v604
        %v677 = vunpack.c.h.b16 %v604
        %v678 = vunpack.c.l.b16 %v605
        %v679 = vunpack.c.h.b16 %v605
        %v680 = vunpack.c.l.b16 %v606
        %v681 = vunpack.c.h.b16 %v606
        %v682 = vunpack.c.l.b16 %v607
        %v683 = vunpack.c.h.b16 %v607
        %v684 = vunpack.c.l.b16 %v608
        %v685 = vunpack.c.h.b16 %v608
        %v686 = vunpack.c.l.b16 %v609
        %v687 = vunpack.c.h.b16 %v609
        %v688 = vunpack.c.l.b16 %v610
        %v689 = vunpack.c.h.b16 %v610
        %v690 = vunpack.c.l.b16 %v611
        %v691 = vunpack.c.h.b16 %v611
        %v692 = vpack.c.b16 %v662, %v660
        %v693 = vpack.c.b16 %v663, %v661
        %v694 = vpack.c.b16 %v666, %v664
        %v695 = vpack.c.b16 %v667, %v665
        %v696 = vpack.c.b16 %v670, %v668
        %v697 = vpack.c.b16 %v671, %v669
        %v698 = vpack.c.b16 %v674, %v672
        %v699 = vpack.c.b16 %v675, %v673
        %v700 = vpack.c.b16 %v678, %v676
        %v701 = vpack.c.b16 %v679, %v677
        %v702 = vpack.c.b16 %v682, %v680
        %v703 = vpack.c.b16 %v683, %v681
        %v704 = vpack.c.b16 %v686, %v684
        %v705 = vpack.c.b16 %v687, %v685
        %v706 = vpack.c.b16 %v690, %v688
        %v707 = vpack.c.b16 %v691, %v689
        %v756 = vunpack.c.l.b16 %v612
        %v757 = vunpack.c.h.b16 %v612
        %v758 = vunpack.c.l.b16 %v613
        %v759 = vunpack.c.h.b16 %v613
        %v760 = vunpack.c.l.b16 %v614
        %v761 = vunpack.c.h.b16 %v614
        %v762 = vunpack.c.l.b16 %v615
        %v763 = vunpack.c.h.b16 %v615
        %v764 = vunpack.c.l.b16 %v616
        %v765 = vunpack.c.h.b16 %v616
        %v766 = vunpack.c.l.b16 %v617
        %v767 = vunpack.c.h.b16 %v617
        %v768 = vunpack.c.l.b16 %v618
        %v769 = vunpack.c.h.b16 %v618
        %v770 = vunpack.c.l.b16 %v619
        %v771 = vunpack.c.h.b16 %v619
        %v772 = vunpack.c.l.b16 %v620
        %v773 = vunpack.c.h.b16 %v620
        %v774 = vunpack.c.l.b16 %v621
        %v775 = vunpack.c.h.b16 %v621
        %v776 = vunpack.c.l.b16 %v622
        %v777 = vunpack.c.h.b16 %v622
        %v778 = vunpack.c.l.b16 %v623
        %v779 = vunpack.c.h.b16 %v623
        %v780 = vunpack.c.l.b16 %v624
        %v781 = vunpack.c.h.b16 %v624
        %v782 = vunpack.c.l.b16 %v625
        %v783 = vunpack.c.h.b16 %v625
        %v784 = vunpack.c.l.b16 %v626
        %v785 = vunpack.c.h.b16 %v626
        %v786 = vunpack.c.l.b16 %v627
        %v787 = vunpack.c.h.b16 %v627
        %v788 = vunpack.c.l.b16 %v628
        %v789 = vunpack.c.h.b16 %v628
        %v790 = vunpack.c.l.b16 %v629
        %v791 = vunpack.c.h.b16 %v629
        %v792 = vunpack.c.l.b16 %v630
        %v793 = vunpack.c.h.b16 %v630
        %v794 = vunpack.c.l.b16 %v631
        %v795 = vunpack.c.h.b16 %v631
        %v796 = vunpack.c.l.b16 %v632
        %v797 = vunpack.c.h.b16 %v632
        %v798 = vunpack.c.l.b16 %v633
        %v799 = vunpack.c.h.b16 %v633
        %v800 = vunpack.c.l.b16 %v634
        %v801 = vunpack.c.h.b16 %v634
        %v802 = vunpack.c.l.b16 %v635
        %v803 = vunpack.c.h.b16 %v635
        %v804 = vunpack.c.l.b16 %v636
        %v805 = vunpack.c.h.b16 %v636
        %v806 = vunpack.c.l.b16 %v637
        %v807 = vunpack.c.h.b16 %v637
        %v808 = vunpack.c.l.b16 %v638
        %v809 = vunpack.c.h.b16 %v638
        %v810 = vunpack.c.l.b16 %v639
        %v811 = vunpack.c.h.b16 %v639
        %v812 = vunpack.c.l.b16 %v640
        %v813 = vunpack.c.h.b16 %v640
        %v814 = vunpack.c.l.b16 %v641
        %v815 = vunpack.c.h.b16 %v641
        %v816 = vunpack.c.l.b16 %v642
        %v817 = vunpack.c.h.b16 %v642
        %v818 = vunpack.c.l.b16 %v643
        %v819 = vunpack.c.h.b16 %v643
        %v820 = vpack.c.b16 %v758, %v756
        %v821 = vpack.c.b16 %v759, %v757
        %v822 = vpack.c.b16 %v762, %v760
        %v823 = vpack.c.b16 %v763, %v761
        %v824 = vpack.c.b16 %v766, %v764
        %v825 = vpack.c.b16 %v767, %v765
        %v826 = vpack.c.b16 %v770, %v768
        %v827 = vpack.c.b16 %v771, %v769
        %v828 = vpack.c.b16 %v774, %v772
        %v829 = vpack.c.b16 %v775, %v773
        %v830 = vpack.c.b16 %v778, %v776
        %v831 = vpack.c.b16 %v779, %v777
        %v832 = vpack.c.b16 %v782, %v780
        %v833 = vpack.c.b16 %v783, %v781
        %v834 = vpack.c.b16 %v786, %v784
        %v835 = vpack.c.b16 %v787, %v785
        %v836 = vpack.c.b16 %v790, %v788
        %v837 = vpack.c.b16 %v791, %v789
        %v838 = vpack.c.b16 %v794, %v792
        %v839 = vpack.c.b16 %v795, %v793
        %v840 = vpack.c.b16 %v798, %v796
        %v841 = vpack.c.b16 %v799, %v797
        %v842 = vpack.c.b16 %v802, %v800
        %v843 = vpack.c.b16 %v803, %v801
        %v844 = vpack.c.b16 %v806, %v804
        %v845 = vpack.c.b16 %v807, %v805
        %v846 = vpack.c.b16 %v810, %v808
        %v847 = vpack.c.b16 %v811, %v809
        %v848 = vpack.c.b16 %v814, %v812
        %v849 = vpack.c.b16 %v815, %v813
        %v850 = vpack.c.b16 %v818, %v816
        %v851 = vpack.c.b16 %v819, %v817
        %884 = vmatprep.subr.bf16.mxu0 %v835
        %885 = vmatpush1.bf16.msra.mxu0 %v834
        %886 = vmatprep.subr.bf16.mxu0 %v833
        %887 = vmatpush1.bf16.msra.mxu0 %v832
        %888 = vmatprep.subr.bf16.mxu0 %v831
        %889 = vmatpush1.bf16.msra.mxu0 %v830
        %890 = vmatprep.subr.bf16.mxu0 %v829
        %891 = vmatpush1.bf16.msra.mxu0 %v828
        %892 = vmatprep.subr.bf16.mxu0 %v827
        %893 = vmatpush1.bf16.msra.mxu0 %v826
        %894 = vmatprep.subr.bf16.mxu0 %v825
        %895 = vmatpush1.bf16.msra.mxu0 %v824
        %896 = vmatprep.subr.bf16.mxu0 %v823
        %897 = vmatpush1.bf16.msra.mxu0 %v822
        %898 = vmatprep.subr.bf16.mxu0 %v821
        %899 = vmatpush1.bf16.msra.mxu0 %v820
        %900 = vmatprep.subr.bf16.mxu0 %v851
        %901 = vmatpush2.bf16.msra.mxu0 %v850
        %902 = vmatprep.subr.bf16.mxu0 %v849
        %903 = vmatpush2.bf16.msra.mxu0 %v848
        %904 = vmatprep.subr.bf16.mxu0 %v847
        %905 = vmatpush2.bf16.msra.mxu0 %v846
        %906 = vmatprep.subr.bf16.mxu0 %v845
        %907 = vmatpush2.bf16.msra.mxu0 %v844
        %908 = vmatprep.subr.bf16.mxu0 %v843
        %909 = vmatpush2.bf16.msra.mxu0 %v842
        %910 = vmatprep.subr.bf16.mxu0 %v841
        %911 = vmatpush2.bf16.msra.mxu0 %v840
        %912 = vmatprep.subr.bf16.mxu0 %v839
        %913 = vmatpush2.bf16.msra.mxu0 %v838
        %914 = vmatprep.subr.bf16.mxu0 %v837
        %915 = vmatpush2.bf16.msra.mxu0 %v836
        %916 = vmatprep.mubr.bf16.mxu0 %v693
        %917 = vmatmul.mubr.bf16.gmra.mxu0 %v692
        %v918 = vpop.f32.mrf.mxu0
        %v919 = vadd.f32 0.0, %v918
        %v920 = vpop.f32.mrf.mxu0
        %v921 = vadd.f32 0.0, %v920
        %v922 = vpop.f32.mrf.mxu0
        %v923 = vadd.f32 0.0, %v922
        %v924 = vpop.f32.mrf.mxu0
        %v925 = vadd.f32 0.0, %v924
        %926 = vmatprep.mubr.bf16.mxu0 %v695
        %927 = vmatmul.mubr.bf16.gmra.mxu0 %v694
        %v928 = vpop.f32.mrf.mxu0
        %v929 = vadd.f32 0.0, %v928
        %v930 = vpop.f32.mrf.mxu0
        %v931 = vadd.f32 0.0, %v930
        %v932 = vpop.f32.mrf.mxu0
        %v933 = vadd.f32 0.0, %v932
        %v934 = vpop.f32.mrf.mxu0
        %v935 = vadd.f32 0.0, %v934
        %936 = vmatprep.mubr.bf16.mxu0 %v697
        %937 = vmatmul.mubr.bf16.gmra.mxu0 %v696
        %v938 = vpop.f32.mrf.mxu0
        %v939 = vadd.f32 0.0, %v938
        %v940 = vpop.f32.mrf.mxu0
        %v941 = vadd.f32 0.0, %v940
        %v942 = vpop.f32.mrf.mxu0
        %v943 = vadd.f32 0.0, %v942
        %v944 = vpop.f32.mrf.mxu0
        %v945 = vadd.f32 0.0, %v944
        %946 = vmatprep.mubr.bf16.mxu0 %v699
        %947 = vmatmul.mubr.bf16.gmra.mxu0 %v698
        %v948 = vpop.f32.mrf.mxu0
        %v949 = vadd.f32 0.0, %v948
        %v950 = vpop.f32.mrf.mxu0
        %v951 = vadd.f32 0.0, %v950
        %v952 = vpop.f32.mrf.mxu0
        %v953 = vadd.f32 0.0, %v952
        %v954 = vpop.f32.mrf.mxu0
        %v955 = vadd.f32 0.0, %v954
        %956 = vmatprep.mubr.bf16.mxu0 %v701
        %957 = vmatmul.mubr.bf16.gmra.mxu0 %v700
        %v958 = vpop.f32.mrf.mxu0
        %v959 = vadd.f32 0.0, %v958
        %v960 = vpop.f32.mrf.mxu0
        %v961 = vadd.f32 0.0, %v960
        %v962 = vpop.f32.mrf.mxu0
        %v963 = vadd.f32 0.0, %v962
        %v964 = vpop.f32.mrf.mxu0
        %v965 = vadd.f32 0.0, %v964
        %966 = vmatprep.mubr.bf16.mxu0 %v703
        %967 = vmatmul.mubr.bf16.gmra.mxu0 %v702
        %v968 = vpop.f32.mrf.mxu0
        %v969 = vadd.f32 0.0, %v968
        %v970 = vpop.f32.mrf.mxu0
        %v971 = vadd.f32 0.0, %v970
        %v972 = vpop.f32.mrf.mxu0
        %v973 = vadd.f32 0.0, %v972
        %v974 = vpop.f32.mrf.mxu0
        %v975 = vadd.f32 0.0, %v974
        %976 = vmatprep.mubr.bf16.mxu0 %v705
        %977 = vmatmul.mubr.bf16.gmra.mxu0 %v704
        %v978 = vpop.f32.mrf.mxu0
        %v979 = vadd.f32 0.0, %v978
        %v980 = vpop.f32.mrf.mxu0
        %v981 = vadd.f32 0.0, %v980
        %v982 = vpop.f32.mrf.mxu0
        %v983 = vadd.f32 0.0, %v982
        %v984 = vpop.f32.mrf.mxu0
        %v985 = vadd.f32 0.0, %v984
        %986 = vmatprep.mubr.bf16.mxu0 %v707
        %987 = vmatmul.mubr.bf16.gmra.mxu0 %v706
        %v988 = vpop.f32.mrf.mxu0
        %v989 = vadd.f32 0.0, %v988
        %v990 = vpop.f32.mrf.mxu0
        %v991 = vadd.f32 0.0, %v990
        %v992 = vpop.f32.mrf.mxu0
        %v993 = vadd.f32 0.0, %v992
        %v994 = vpop.f32.mrf.mxu0
        %v995 = vadd.f32 0.0, %v994
        %996 = vdwg.mxu0
        %v997 = vadd.f32 %v564, %v919
        %v998 = vadd.f32 %v565, %v921
        %v999 = vadd.f32 %v566, %v923
        %v1000 = vadd.f32 %v567, %v925
        %v1001 = vadd.f32 %v568, %v929
        %v1002 = vadd.f32 %v569, %v931
        %v1003 = vadd.f32 %v570, %v933
        %v1004 = vadd.f32 %v571, %v935
        %v1005 = vadd.f32 %v572, %v939
        %v1006 = vadd.f32 %v573, %v941
        %v1007 = vadd.f32 %v574, %v943
        %v1008 = vadd.f32 %v575, %v945
        %v1009 = vadd.f32 %v576, %v949
        %v1010 = vadd.f32 %v577, %v951
        %v1011 = vadd.f32 %v578, %v953
        %v1012 = vadd.f32 %v579, %v955
        %v1013 = vadd.f32 %v580, %v959
        %v1014 = vadd.f32 %v581, %v961
        %v1015 = vadd.f32 %v582, %v963
        %v1016 = vadd.f32 %v583, %v965
        %v1017 = vadd.f32 %v584, %v969
        %v1018 = vadd.f32 %v585, %v971
        %v1019 = vadd.f32 %v586, %v973
        %v1020 = vadd.f32 %v587, %v975
        %v1021 = vadd.f32 %v588, %v979
        %v1022 = vadd.f32 %v589, %v981
        %v1023 = vadd.f32 %v590, %v983
        %v1024 = vadd.f32 %v591, %v985
        %v1025 = vadd.f32 %v592, %v989
        %v1026 = vadd.f32 %v593, %v991
        %v1027 = vadd.f32 %v594, %v993
        %v1028 = vadd.f32 %v595, %v995
        %1029 = vst [vmem:[%s301] sm:$0xff] %v997
        %1030 = vst [vmem:[%s301 + $0x8] sm:$0xff] %v998
        %1031 = vst [vmem:[%s301 + $0x10] sm:$0xff] %v999
        %1032 = vst [vmem:[%s301 + $0x18] sm:$0xff] %v1000
        %1033 = vst [vmem:[%s301 + $0x20] sm:$0xff] %v1001
        %1034 = vst [vmem:[%s301 + $0x28] sm:$0xff] %v1002
        %1035 = vst [vmem:[%s301 + $0x30] sm:$0xff] %v1003
        %1036 = vst [vmem:[%s301 + $0x38] sm:$0xff] %v1004
        %1037 = vst [vmem:[%s301 + $0x40] sm:$0xff] %v1005
        %1038 = vst [vmem:[%s301 + $0x48] sm:$0xff] %v1006
        %1039 = vst [vmem:[%s301 + $0x50] sm:$0xff] %v1007
        %1040 = vst [vmem:[%s301 + $0x58] sm:$0xff] %v1008
        %1041 = vst [vmem:[%s301 + $0x60] sm:$0xff] %v1009
        %1042 = vst [vmem:[%s301 + $0x68] sm:$0xff] %v1010
        %1043 = vst [vmem:[%s301 + $0x70] sm:$0xff] %v1011
        %1044 = vst [vmem:[%s301 + $0x78] sm:$0xff] %v1012
        %1045 = vst [vmem:[%s301 + $0x80] sm:$0xff] %v1013
        %1046 = vst [vmem:[%s301 + $0x88] sm:$0xff] %v1014
        %1047 = vst [vmem:[%s301 + $0x90] sm:$0xff] %v1015
        %1048 = vst [vmem:[%s301 + $0x98] sm:$0xff] %v1016
        %1049 = vst [vmem:[%s301 + $0xa0] sm:$0xff] %v1017
        %1050 = vst [vmem:[%s301 + $0xa8] sm:$0xff] %v1018
        %1051 = vst [vmem:[%s301 + $0xb0] sm:$0xff] %v1019
        %1052 = vst [vmem:[%s301 + $0xb8] sm:$0xff] %v1020
        %1053 = vst [vmem:[%s301 + $0xc0] sm:$0xff] %v1021
        %1054 = vst [vmem:[%s301 + $0xc8] sm:$0xff] %v1022
        %1055 = vst [vmem:[%s301 + $0xd0] sm:$0xff] %v1023
        %1056 = vst [vmem:[%s301 + $0xd8] sm:$0xff] %v1024
        %1057 = vst [vmem:[%s301 + $0xe0] sm:$0xff] %v1025
        %1058 = vst [vmem:[%s301 + $0xe8] sm:$0xff] %v1026
        %1059 = vst [vmem:[%s301 + $0xf0] sm:$0xff] %v1027
        %1060 = vst [vmem:[%s301 + $0xf8] sm:$0xff] %v1028
        %s1061 = sand.u32 %s159, 1
        %s1062 = scalar_lea.sflag [#allocation4], %s1061
        %s1063 = sand.u32 %s159, 1
        %s1064 = smul.addr %s1063, 256
        %s1065 = scalar_lea.vmem [#allocation7], %s1064
        // Predicated region
        $region49: #{tpu_custom_call.1} parent=35 // pred_check
          %p1066 = pneg %p169
        $region50: #{tpu_custom_call.1} parent=35 // pred_check_branch
          %1068 = sbr.rel (%p1066) target = $region52
        $region51: #{tpu_custom_call.1} parent=35 // pred_region
          %s1069 = smul.u32 16, %s27
          %s1070 = smul.u32 2, %s28
          %s1072 = ssub.s32 4096, 4096
          %1073 = vsyncadd %s1062, %s1072
          %s1074 = smul.addr %s1069, 2
          %s1075 = sadd.s32 %s1070, %s1074
          %s1076 = smul.addr %s1075, 128
          %s1077 = scalar_lea.hbm %s4, %s1076
          %s1078 = sshll.u32 %s1065, 4
          %s1079 = int_to_ptr.vmem [resolvable:$true] %s1078
          %1084 = dma.vmem_to_hbm [thread:$0]  %s1079, 4096, %s1077, %s1062, 256, 256, 16
        $region52: #{tpu_custom_call.1} parent=35 // pred_fallthru
          _
      $region36: #{tpu_custom_call.1} parent=5 // pred_fallthru
        _
      %p1085 = scmp.le.s32.totalorder 2, %s17
      // Predicated region
      $region53: #{tpu_custom_call.1} parent=5 // pred_check
        %p1086 = pneg %p1085
      $region54: #{tpu_custom_call.1} parent=5 // pred_check_branch
        %1088 = sbr.rel (%p1086) target = $region56
      $region55: #{tpu_custom_call.1} parent=5 // pred_region
        %s1089 = ssub.s32 %s17, 2
        // Predicated region
        $region57: #{tpu_custom_call.1} parent=55 // pred_check
          %p1090 = pneg %p175
        $region58: #{tpu_custom_call.1} parent=55 // pred_check_branch
          %1092 = sbr.rel (%p1090) target = $region60
        $region59: #{tpu_custom_call.1} parent=55 // pred_region
          %s1093 = sand.u32 %s160, 1
          %s1094 = scalar_lea.sflag [#allocation4], %s1093
          %s1095 = sand.u32 %s160, 1
          %s1096 = smul.addr %s1095, 256
          %s1097 = scalar_lea.vmem [#allocation7], %s1096
          %1098 = dma.done %s1094, 4096
        $region60: #{tpu_custom_call.1} parent=55 // pred_fallthru
          _
      $region56: #{tpu_custom_call.1} parent=5 // pred_fallthru
        _
    $region6: #{tpu_custom_call.1} parent=1 // loop_footer
      %s21 = sadd.s32 1, %s17
    $region7: #{tpu_custom_call.1} parent=1 // loop_footer_branch
      %16 = sbr.rel target = $region3
    $region8: #{tpu_custom_call.1} parent=1 // loop_exit
      _
    %1099 = vsyncpa [#allocation3], 1
    %s1100 = scalar_lea.sflag [#allocation3], 1
    %1101 = vsyncpa %s1100, 1
    %1102 = vsyncpa [#allocation6], 1
    %1103 = vsyncpa [#allocation4], 1
    %s1104 = scalar_lea.sflag [#allocation4], 1
    %1105 = vsyncpa %s1104, 1

</llo_original>
